<compile_context>
chip_gen: v6e
topology: v6e:2x2x1
jax: 0.10.0
libtpu: 0.0.40
codegen_flags: <defaults>
</compile_context>

<pallas_src>
import functools

import jax
import jax.numpy as jnp
from jax import lax
from jax.experimental import pallas as pl
from jax.experimental.pallas import tpu as pltpu


def _round_up(x, m):
    return (x + m - 1) // m * m


def critic_kernel(x_ref,
                  w1_ref, b1_ref,
                  w2_ref, b2_ref,
                  w3_ref, b3_ref,
                  w4_ref, b4_ref,
                  o_ref, *, matmul_dtype):
    # Hoisted bias loads (once per grid step; body is straight-line).
    b1 = b1_ref[...]
    b2 = b2_ref[...]
    b3 = b3_ref[...]
    b4 = b4_ref[0, 0]  # scalar from SMEM

    # fc1 + relu  (MXU, operands in matmul_dtype, f32 accumulate; elementwise stays f32)
    h = jnp.dot(x_ref[...].astype(matmul_dtype), w1_ref[...],
                preferred_element_type=jnp.float32)
    h = jnp.maximum(h + b1, 0.0)
    # fc2 + relu
    h = jnp.dot(h.astype(matmul_dtype), w2_ref[...],
                preferred_element_type=jnp.float32)
    h = jnp.maximum(h + b2, 0.0)
    # fc3 + relu
    h = jnp.dot(h.astype(matmul_dtype), w3_ref[...],
                preferred_element_type=jnp.float32)
    h = jnp.maximum(h + b3, 0.0)
    # fc4: (1,128) . (TM,128) contracting last-vs-last -> lane-dense (1, TM) row.
    v = lax.dot_general(w4_ref[...], h.astype(matmul_dtype),
                        dimension_numbers=(((1,), (1,)), ((), ())),
                        preferred_element_type=jnp.float32)
    o_ref[...] = (v + b4).astype(o_ref.dtype)


def prepare_params(params, *, matmul_dtype=jnp.bfloat16):
    """One-time preprocessing (do NOT call per step): pad w1's input dim to a multiple
    of 8, reshape w4/b4, pre-cast matmul weights. Weights stored as (in, out)."""
    K = params["w1"].shape[0]
    K_pad = max(_round_up(K, 8), 8)
    w1 = params["w1"]
    if K_pad != K:
        w1 = jnp.pad(w1, ((0, K_pad - K), (0, 0)))
    return {
        "K": K,
        "K_pad": K_pad,
        "matmul_dtype": matmul_dtype,
        "w1": w1.astype(matmul_dtype),
        "b1": params["b1"].reshape(1, -1).astype(jnp.float32),
        "w2": params["w2"].astype(matmul_dtype),
        "b2": params["b2"].reshape(1, -1).astype(jnp.float32),
        "w3": params["w3"].astype(matmul_dtype),
        "b3": params["b3"].reshape(1, -1).astype(jnp.float32),
        "w4": params["w4"].reshape(1, -1).astype(matmul_dtype),
        "b4": params["b4"].reshape(1, 1).astype(jnp.float32),
    }


def _choose_tile(B, cap):
    """Largest batch tile <= cap (amortizes per-step overhead). Multiple of 8 always,
    multiple of 128 whenever the grid has >1 step; split a single large tile in two so
    v7x's 2 TensorCores both get work."""
    TM = min(cap, max(_round_up(B, 8), 8))
    if TM > 512 and _round_up(B, TM) // TM < 2:
        TM = _round_up((TM + 1) // 2, 128)
    return TM


def critic_forward(state, prepped, *, tm=1024):
    """state: (B, state_dim) f32; prepped: output of prepare_params."""
    B, K = state.shape
    assert K == prepped["K"], f"state_dim mismatch: {K} vs {prepped['K']}"
    K_pad = prepped["K_pad"]

    if K_pad != K:
        state = jnp.pad(state, ((0, 0), (0, K_pad - K)))

    TM = _choose_tile(B, tm)
    B_pad = _round_up(B, TM)
    if B_pad != B:
        state = jnp.pad(state, ((0, B_pad - B), (0, 0)))

    def resident(shape):
        # Same block every grid step -> DMA'd once, stays VMEM-resident.
        return pl.BlockSpec(shape, lambda i: (0, 0))

    in_specs = [
        pl.BlockSpec((TM, K_pad), lambda i: (i, 0)),        # state: tiled over batch
        resident((K_pad, 128)), resident((1, 128)),          # fc1
        resident((128, 256)),   resident((1, 256)),          # fc2
        resident((256, 128)),   resident((1, 128)),          # fc3
        resident((1, 128)),                                  # fc4 weight row
        pl.BlockSpec(memory_space=pltpu.MemorySpace.SMEM),   # fc4 bias scalar (1,1)
    ]
    # Lane-dense output: (1, TM) blocks of a (1, B_pad) row.
    out_specs = pl.BlockSpec((1, TM), lambda i: (0, i))

    kernel = functools.partial(critic_kernel, matmul_dtype=prepped["matmul_dtype"])

    out = pl.pallas_call(
        kernel,
        out_shape=jax.ShapeDtypeStruct((1, B_pad), jnp.float32),
        grid=(B_pad // TM,),
        in_specs=in_specs,
        out_specs=out_specs,
        compiler_params=pltpu.CompilerParams(
            dimension_semantics=("parallel",),
        ),
    )(state,
      prepped["w1"], prepped["b1"],
      prepped["w2"], prepped["b2"],
      prepped["w3"], prepped["b3"],
      prepped["w4"], prepped["b4"])

    return out.reshape(B_pad, 1)[:B]


def init_params(key, state_dim):
    """Deterministic init mirroring nn.Linear shapes (weights stored as (in, out))."""
    dims = [(state_dim, 128), (128, 256), (256, 128), (128, 1)]
    params = {}
    keys = jax.random.split(key, 2 * len(dims))
    for i, (fan_in, fan_out) in enumerate(dims):
        bound = 1.0 / jnp.sqrt(fan_in)
        w = jax.random.uniform(keys[2 * i], (fan_in, fan_out),
                               minval=-bound, maxval=bound, dtype=jnp.float32)
        b = jax.random.uniform(keys[2 * i + 1], (1, fan_out),
                               minval=-bound, maxval=bound, dtype=jnp.float32)
        params[f"w{i + 1}"] = w
        params[f"b{i + 1}"] = b
    return params


if __name__ == "__main__":
    key = jax.random.PRNGKey(0)
    k_param, k_state = jax.random.split(key)

    B, state_dim = 8, 32
    params = init_params(k_param, state_dim)
    state = jax.random.normal(k_state, (B, state_dim), dtype=jnp.float32)

    # Pure-JAX reference (same params, same math).
    def ref(x, p):
        h = jnp.maximum(x @ p["w1"] + p["b1"], 0.0)
        h = jnp.maximum(h @ p["w2"] + p["b2"], 0.0)
        h = jnp.maximum(h @ p["w3"] + p["b3"], 0.0)
        return h @ p["w4"] + p["b4"]

    expected = ref(state, params)

    # Exact-precision path (f32 matmul operands): strict tolerance.
    prepped_f32 = prepare_params(params, matmul_dtype=jnp.float32)
    value = jax.block_until_ready(critic_forward(state, prepped_f32))
    assert value.shape == (B, 1)
    assert jnp.allclose(value, expected, atol=1e-5, rtol=1e-5)

    # Throughput path (bf16 matmul operands, f32 accumulate): loose tolerance.
    prepped_bf16 = prepare_params(params, matmul_dtype=jnp.bfloat16)
    value_bf16 = jax.block_until_ready(critic_forward(state, prepped_bf16))
    assert value_bf16.shape == (B, 1)
    assert jnp.allclose(value_bf16, expected, atol=1e-1, rtol=1e-1)

    print("KERNEL_OK")
</pallas_src>

<mosaic_0001>
module attributes {stable_mosaic.version = 11 : i64} {
  func.func @critic_kernel(%arg0: i32, %arg1: memref<8x32xf32, #tpu.memory_space<vmem>>, %arg2: memref<32x128xf32, #tpu.memory_space<vmem>>, %arg3: memref<1x128xf32, #tpu.memory_space<vmem>>, %arg4: memref<128x256xf32, #tpu.memory_space<vmem>>, %arg5: memref<1x256xf32, #tpu.memory_space<vmem>>, %arg6: memref<256x128xf32, #tpu.memory_space<vmem>>, %arg7: memref<1x128xf32, #tpu.memory_space<vmem>>, %arg8: memref<1x128xf32, #tpu.memory_space<vmem>>, %arg9: memref<1x1xf32, #tpu.memory_space<smem>>, %arg10: memref<1x8xf32, #tpu.memory_space<vmem>>) attributes {dimension_semantics = [#tpu.dimension_semantics<parallel>], iteration_bounds = array<i64: 1>, scalar_prefetch = 0 : i64, scratch_operands = 0 : i64, tpu.core_type = #tpu.core_type<tc>, window_params = [{transform_indices = @transform_0, window_bounds = array<i64: 8, 32>}, {pipeline_mode = #tpu.pipeline_mode<synchronous>, transform_indices = @transform_1, window_bounds = array<i64: 32, 128>}, {pipeline_mode = #tpu.pipeline_mode<synchronous>, transform_indices = @transform_2, window_bounds = array<i64: 1, 128>}, {pipeline_mode = #tpu.pipeline_mode<synchronous>, transform_indices = @transform_3, window_bounds = array<i64: 128, 256>}, {pipeline_mode = #tpu.pipeline_mode<synchronous>, transform_indices = @transform_4, window_bounds = array<i64: 1, 256>}, {pipeline_mode = #tpu.pipeline_mode<synchronous>, transform_indices = @transform_5, window_bounds = array<i64: 256, 128>}, {pipeline_mode = #tpu.pipeline_mode<synchronous>, transform_indices = @transform_6, window_bounds = array<i64: 1, 128>}, {pipeline_mode = #tpu.pipeline_mode<synchronous>, transform_indices = @transform_7, window_bounds = array<i64: 1, 128>}, {transform_indices = @transform_8, window_bounds = array<i64: 1, 1>}, {transform_indices = @transform_9, window_bounds = array<i64: 1, 8>}]} {
    %c0 = arith.constant 0 : index
    %c0_0 = arith.constant 0 : index
    %0 = vector.load %arg3[%c0, %c0_0] : memref<1x128xf32, #tpu.memory_space<vmem>>, vector<1x128xf32>
    %c0_1 = arith.constant 0 : index
    %c0_2 = arith.constant 0 : index
    %1 = vector.load %arg5[%c0_1, %c0_2] : memref<1x256xf32, #tpu.memory_space<vmem>>, vector<1x256xf32>
    %c0_3 = arith.constant 0 : index
    %c0_4 = arith.constant 0 : index
    %2 = vector.load %arg7[%c0_3, %c0_4] : memref<1x128xf32, #tpu.memory_space<vmem>>, vector<1x128xf32>
    %c0_5 = arith.constant 0 : index
    %c0_6 = arith.constant 0 : index
    %3 = memref.load %arg9[%c0_5, %c0_6] : memref<1x1xf32, #tpu.memory_space<smem>>
    %c0_7 = arith.constant 0 : index
    %c0_8 = arith.constant 0 : index
    %4 = vector.load %arg1[%c0_7, %c0_8] : memref<8x32xf32, #tpu.memory_space<vmem>>, vector<8x32xf32>
    %c0_9 = arith.constant 0 : index
    %c0_10 = arith.constant 0 : index
    %5 = vector.load %arg2[%c0_9, %c0_10] : memref<32x128xf32, #tpu.memory_space<vmem>>, vector<32x128xf32>
    %cst = arith.constant dense<0.000000e+00> : vector<8x128xf32>
    %6 = tpu.matmul %4, %5, %cst {dimension_numbers = #tpu.dot_dimension_numbers<[1], [0], [0], [1], [0, 0, 1, 1], [], []>} : vector<8x32xf32>, vector<32x128xf32>, vector<8x128xf32> -> vector<8x128xf32>
    %7 = vector.broadcast %0 : vector<1x128xf32> to vector<8x128xf32>
    %8 = arith.addf %6, %7 : vector<8x128xf32>
    %cst_11 = arith.constant 0.000000e+00 : f32
    %9 = vector.broadcast %cst_11 : f32 to vector<8x128xf32>
    %10 = arith.maximumf %8, %9 : vector<8x128xf32>
    %c0_12 = arith.constant 0 : index
    %c0_13 = arith.constant 0 : index
    %11 = vector.load %arg4[%c0_12, %c0_13] : memref<128x256xf32, #tpu.memory_space<vmem>>, vector<128x256xf32>
    %cst_14 = arith.constant dense<0.000000e+00> : vector<8x256xf32>
    %12 = tpu.matmul %10, %11, %cst_14 {dimension_numbers = #tpu.dot_dimension_numbers<[1], [0], [0], [1], [0, 0, 1, 1], [], []>} : vector<8x128xf32>, vector<128x256xf32>, vector<8x256xf32> -> vector<8x256xf32>
    %13 = vector.broadcast %1 : vector<1x256xf32> to vector<8x256xf32>
    %14 = arith.addf %12, %13 : vector<8x256xf32>
    %cst_15 = arith.constant 0.000000e+00 : f32
    %15 = vector.broadcast %cst_15 : f32 to vector<8x256xf32>
    %16 = arith.maximumf %14, %15 : vector<8x256xf32>
    %c0_16 = arith.constant 0 : index
    %c0_17 = arith.constant 0 : index
    %17 = vector.load %arg6[%c0_16, %c0_17] : memref<256x128xf32, #tpu.memory_space<vmem>>, vector<256x128xf32>
    %cst_18 = arith.constant dense<0.000000e+00> : vector<8x128xf32>
    %18 = tpu.matmul %16, %17, %cst_18 {dimension_numbers = #tpu.dot_dimension_numbers<[1], [0], [0], [1], [0, 0, 1, 1], [], []>} : vector<8x256xf32>, vector<256x128xf32>, vector<8x128xf32> -> vector<8x128xf32>
    %19 = vector.broadcast %2 : vector<1x128xf32> to vector<8x128xf32>
    %20 = arith.addf %18, %19 : vector<8x128xf32>
    %cst_19 = arith.constant 0.000000e+00 : f32
    %21 = vector.broadcast %cst_19 : f32 to vector<8x128xf32>
    %22 = arith.maximumf %20, %21 : vector<8x128xf32>
    %c0_20 = arith.constant 0 : index
    %c0_21 = arith.constant 0 : index
    %23 = vector.load %arg8[%c0_20, %c0_21] : memref<1x128xf32, #tpu.memory_space<vmem>>, vector<1x128xf32>
    %cst_22 = arith.constant dense<0.000000e+00> : vector<1x8xf32>
    %24 = tpu.matmul %23, %22, %cst_22 {dimension_numbers = #tpu.dot_dimension_numbers<[1], [1], [0], [0], [0, 0, 1, 0], [], []>} : vector<1x128xf32>, vector<8x128xf32>, vector<1x8xf32> -> vector<1x8xf32>
    %25 = vector.broadcast %3 : f32 to vector<1x8xf32>
    %26 = arith.addf %24, %25 : vector<1x8xf32>
    %c0_23 = arith.constant 0 : index
    %c0_24 = arith.constant 0 : index
    %27 = vector.load %arg10[%c0_23, %c0_24] : memref<1x8xf32, #tpu.memory_space<vmem>>, vector<1x8xf32>
    tpu.vector_store %arg10[%c0_23, %c0_24], %26 {strides = array<i32>} : memref<1x8xf32, #tpu.memory_space<vmem>>, vector<1x8xf32>,
    return
  }
  func.func @transform_0(%arg0: i32) -> (i32, i32) {
    %c0_i32 = arith.constant 0 : i32
    %c0_i32_0 = arith.constant 0 : i32
    return %arg0, %c0_i32 : i32, i32
  }
  func.func @transform_1(%arg0: i32) -> (i32, i32) {
    %c0_i32 = arith.constant 0 : i32
    %c0_i32_0 = arith.constant 0 : i32
    %c0_i32_1 = arith.constant 0 : i32
    return %c0_i32, %c0_i32_0 : i32, i32
  }
  func.func @transform_2(%arg0: i32) -> (i32, i32) {
    %c0_i32 = arith.constant 0 : i32
    %c0_i32_0 = arith.constant 0 : i32
    %c0_i32_1 = arith.constant 0 : i32
    return %c0_i32, %c0_i32_0 : i32, i32
  }
  func.func @transform_3(%arg0: i32) -> (i32, i32) {
    %c0_i32 = arith.constant 0 : i32
    %c0_i32_0 = arith.constant 0 : i32
    %c0_i32_1 = arith.constant 0 : i32
    return %c0_i32, %c0_i32_0 : i32, i32
  }
  func.func @transform_4(%arg0: i32) -> (i32, i32) {
    %c0_i32 = arith.constant 0 : i32
    %c0_i32_0 = arith.constant 0 : i32
    %c0_i32_1 = arith.constant 0 : i32
    return %c0_i32, %c0_i32_0 : i32, i32
  }
  func.func @transform_5(%arg0: i32) -> (i32, i32) {
    %c0_i32 = arith.constant 0 : i32
    %c0_i32_0 = arith.constant 0 : i32
    %c0_i32_1 = arith.constant 0 : i32
    return %c0_i32, %c0_i32_0 : i32, i32
  }
  func.func @transform_6(%arg0: i32) -> (i32, i32) {
    %c0_i32 = arith.constant 0 : i32
    %c0_i32_0 = arith.constant 0 : i32
    %c0_i32_1 = arith.constant 0 : i32
    return %c0_i32, %c0_i32_0 : i32, i32
  }
  func.func @transform_7(%arg0: i32) -> (i32, i32) {
    %c0_i32 = arith.constant 0 : i32
    %c0_i32_0 = arith.constant 0 : i32
    %c0_i32_1 = arith.constant 0 : i32
    return %c0_i32, %c0_i32_0 : i32, i32
  }
  func.func @transform_8(%arg0: i32) -> (i32, i32) {
    %c0_i32 = arith.constant 0 : i32
    %c0_i32_0 = arith.constant 0 : i32
    %c0_i32_1 = arith.constant 0 : i32
    return %c0_i32, %c0_i32_0 : i32, i32
  }
  func.func @transform_9(%arg0: i32) -> (i32, i32) {
    %c0_i32 = arith.constant 0 : i32
    %c0_i32_0 = arith.constant 0 : i32
    return %c0_i32, %arg0 : i32, i32
  }
}

</mosaic_0001>

<llo_original>
// kernel: tpu_custom_call.1
$region0: #{tpu_custom_call.1}
  #allocation0 [shape = 'u32[]', space=smem, size = 0x4, offset = 0x4, fixed_abs, tag = 'smem constant byte address 0x4 - core index']
  #allocation1 [shape = 'u32[144,128]{1,0:T(1,128)}', space=vmem, size = 0x12000, scoped, tag = 'internal scratch']
  #allocation2 [shape = 'f32[1,1]{1,0:T(1,128)S(6)}', space=smem, size = 0x200, scoped, tag = 'scoped memory for tpu_custom_call.1']
  %s0 = inlined_call_operand.hbm [shape: f32[8,32], index: 0, kind: input, shape index: {}]
  %s1 = inlined_call_operand.hbm [shape: f32[32,128], index: 1, kind: input, shape index: {}]
  %s2 = inlined_call_operand.vmem [shape: f32[1,128], index: 2, kind: input, shape index: {}]
  %s3 = inlined_call_operand.hbm [shape: f32[128,256], index: 3, kind: input, shape index: {}]
  %s4 = inlined_call_operand.vmem [shape: f32[1,256], index: 4, kind: input, shape index: {}]
  %s5 = inlined_call_operand.hbm [shape: f32[256,128], index: 5, kind: input, shape index: {}]
  %s6 = inlined_call_operand.vmem [shape: f32[1,128], index: 6, kind: input, shape index: {}]
  %s7 = inlined_call_operand.vmem [shape: f32[1,128], index: 7, kind: input, shape index: {}]
  %s8 = inlined_call_operand.<no memory space> [shape: f32[1,1], index: 8, kind: input, shape index: {}]
  %s9 = inlined_call_operand.hbm [shape: f32[1,8], index: 9, kind: output, shape index: {}]
  %s10 = sld [smem:[#allocation0]]
  $region62: #{tpu_custom_call.1} parent=0
    _
  %s12 = ssub.s32 1, %s10
  %s13 = scalar_select 0, %s12, %s10
  %14 = sst [smem:[#allocation2]] %s8
  $region1: #{tpu_custom_call.1} parent=0
    #allocation3 [shape = 'u8[4096]{0}', space=vmem, size = 0x1000, scoped, tag = 'input window, operand 0, single buffered']
    #allocation4 [shape = 's32[1]{0}', space=sflag, size = 0x4, scoped, tag = 'scoped memory for tpu_custom_call.1']
    #allocation5 [shape = 's32[1]{0}', space=sflag, size = 0x4, scoped, tag = 'scoped memory for tpu_custom_call.1']
    #allocation6 [shape = 'u8[16384]{0}', space=vmem, size = 0x4000, scoped, tag = 'input window, operand 1, single buffered']
    #allocation7 [shape = 's32[1]{0}', space=sflag, size = 0x4, scoped, tag = 'scoped memory for tpu_custom_call.1']
    #allocation8 [shape = 'u8[131072]{0}', space=vmem, size = 0x20000, scoped, tag = 'input window, operand 3, single buffered']
    #allocation9 [shape = 'u8[131072]{0}', space=vmem, size = 0x20000, scoped, tag = 'input window, operand 5, single buffered']
    #allocation10 [shape = 's32[1]{0}', space=sflag, size = 0x4, scoped, tag = 'scoped memory for tpu_custom_call.1']
    #allocation11 [shape = 'u8[512]{0}', space=vmem, size = 0x400, scoped, tag = 'output window, operand 0, single buffered']
    %15 = vsyncpa [#allocation4], 0
    %16 = vsyncpa [#allocation7], 0
    %17 = vsyncpa [#allocation10], 0
    %18 = vsyncpa [#allocation5], 0
    // Predicated region
    $region2: #{tpu_custom_call.1} parent=1 // pred_check
      _
    $region3: #{tpu_custom_call.1} parent=1 // pred_check_branch
      %20 = sbr.rel (0) target = $region5
    $region4: #{tpu_custom_call.1} parent=1 // pred_region
      %s22 = ssub.s32 128, 128
      %23 = vsyncadd [#allocation4], %s22
      %s25 = sshll.u32 [#allocation3], 4
      %s26 = int_to_ptr.vmem [resolvable:$true] %s25
      %28 = dma.hbm_to_vmem [thread:$0]  %s0, 128, %s26, [#allocation4]
    $region5: #{tpu_custom_call.1} parent=1 // pred_fallthru
      _
    // Predicated region
    $region6: #{tpu_custom_call.1} parent=1 // pred_check
      _
    $region7: #{tpu_custom_call.1} parent=1 // pred_check_branch
      %30 = sbr.rel (0) target = $region9
    $region8: #{tpu_custom_call.1} parent=1 // pred_region
      %s32 = ssub.s32 512, 512
      %33 = vsyncadd [#allocation7], %s32
      %s34 = sshll.u32 [#allocation6], 4
      %s35 = int_to_ptr.vmem [resolvable:$true] %s34
      %40 = dma.hbm_to_vmem [thread:$0]  %s1, 512, %s35, [#allocation7], 128, 128, 8
    $region9: #{tpu_custom_call.1} parent=1 // pred_fallthru
      _
    // Predicated region
    $region10: #{tpu_custom_call.1} parent=1 // pred_check
      _
    $region11: #{tpu_custom_call.1} parent=1 // pred_check_branch
      %42 = sbr.rel (0) target = $region13
    $region12: #{tpu_custom_call.1} parent=1 // pred_region
      _
    $region13: #{tpu_custom_call.1} parent=1 // pred_fallthru
      _
    // Predicated region
    $region14: #{tpu_custom_call.1} parent=1 // pred_check
      _
    $region15: #{tpu_custom_call.1} parent=1 // pred_check_branch
      %44 = sbr.rel (0) target = $region17
    $region16: #{tpu_custom_call.1} parent=1 // pred_region
      %s46 = ssub.s32 4096, 4096
      %47 = vsyncadd [#allocation7], %s46
      %s48 = sshll.u32 [#allocation8], 4
      %s49 = int_to_ptr.vmem [resolvable:$true] %s48
      %54 = dma.hbm_to_vmem [thread:$0]  %s3, 4096, %s49, [#allocation7], 256, 256, 16
    $region17: #{tpu_custom_call.1} parent=1 // pred_fallthru
      _
    // Predicated region
    $region18: #{tpu_custom_call.1} parent=1 // pred_check
      _
    $region19: #{tpu_custom_call.1} parent=1 // pred_check_branch
      %56 = sbr.rel (0) target = $region21
    $region20: #{tpu_custom_call.1} parent=1 // pred_region
      _
    $region21: #{tpu_custom_call.1} parent=1 // pred_fallthru
      _
    // Predicated region
    $region22: #{tpu_custom_call.1} parent=1 // pred_check
      _
    $region23: #{tpu_custom_call.1} parent=1 // pred_check_branch
      %58 = sbr.rel (0) target = $region25
    $region24: #{tpu_custom_call.1} parent=1 // pred_region
      %s60 = ssub.s32 4096, 4096
      %61 = vsyncadd [#allocation10], %s60
      %s62 = sshll.u32 [#allocation9], 4
      %s63 = int_to_ptr.vmem [resolvable:$true] %s62
      %68 = dma.hbm_to_vmem [thread:$0]  %s5, 4096, %s63, [#allocation10], 128, 128, 8
    $region25: #{tpu_custom_call.1} parent=1 // pred_fallthru
      _
    // Predicated region
    $region26: #{tpu_custom_call.1} parent=1 // pred_check
      _
    $region27: #{tpu_custom_call.1} parent=1 // pred_check_branch
      %70 = sbr.rel (0) target = $region29
    $region28: #{tpu_custom_call.1} parent=1 // pred_region
      _
    $region29: #{tpu_custom_call.1} parent=1 // pred_fallthru
      _
    // Predicated region
    $region30: #{tpu_custom_call.1} parent=1 // pred_check
      _
    $region31: #{tpu_custom_call.1} parent=1 // pred_check_branch
      %72 = sbr.rel (0) target = $region33
    $region32: #{tpu_custom_call.1} parent=1 // pred_region
      _
    $region33: #{tpu_custom_call.1} parent=1 // pred_fallthru
      _
    // Predicated region
    $region34: #{tpu_custom_call.1} parent=1 // pred_check
      _
    $region35: #{tpu_custom_call.1} parent=1 // pred_check_branch
      %74 = sbr.rel (0) target = $region37
    $region36: #{tpu_custom_call.1} parent=1 // pred_region
      _
    $region37: #{tpu_custom_call.1} parent=1 // pred_fallthru
      _
    // Predicated region
    $region38: #{tpu_custom_call.1} parent=1 // pred_check
      _
    $region39: #{tpu_custom_call.1} parent=1 // pred_check_branch
      %76 = sbr.rel (0) target = $region41
    $region40: #{tpu_custom_call.1} parent=1 // pred_region
      %77 = dma.done [#allocation4], 128
    $region41: #{tpu_custom_call.1} parent=1 // pred_fallthru
      _
    // Predicated region
    $region42: #{tpu_custom_call.1} parent=1 // pred_check
      _
    $region43: #{tpu_custom_call.1} parent=1 // pred_check_branch
      %79 = sbr.rel (0) target = $region45
    $region44: #{tpu_custom_call.1} parent=1 // pred_region
      %80 = dma.done [#allocation7], 512
    $region45: #{tpu_custom_call.1} parent=1 // pred_fallthru
      _
    // Predicated region
    $region46: #{tpu_custom_call.1} parent=1 // pred_check
      _
    $region47: #{tpu_custom_call.1} parent=1 // pred_check_branch
      %82 = sbr.rel (0) target = $region49
    $region48: #{tpu_custom_call.1} parent=1 // pred_region
      %83 = dma.done [#allocation7], 4096
    $region49: #{tpu_custom_call.1} parent=1 // pred_fallthru
      _
    // Predicated region
    $region50: #{tpu_custom_call.1} parent=1 // pred_check
      _
    $region51: #{tpu_custom_call.1} parent=1 // pred_check_branch
      %85 = sbr.rel (0) target = $region53
    $region52: #{tpu_custom_call.1} parent=1 // pred_region
      %86 = dma.done [#allocation10], 4096
    $region53: #{tpu_custom_call.1} parent=1 // pred_fallthru
      _
    %v87 = vld [vmem:[%s2] sm:$0x1]
    %v88 = vld [vmem:[%s4] sm:$0x3]
    %v89 = vld [vmem:[%s6] sm:$0x1]
    %s90 = sld [smem:[#allocation2]]
    %v91 = vld [vmem:[#allocation3] sm:$0xff]
    %v92 = vld [vmem:[#allocation6] sm:$0xff]
    %v93 = vld [vmem:[#allocation6 + $0x8] sm:$0xff]
    %v94 = vld [vmem:[#allocation6 + $0x10] sm:$0xff]
    %v95 = vld [vmem:[#allocation6 + $0x18] sm:$0xff]
    %v97 = vlaneseq
    %v98 = vshrl.u32 %v97, 7
    %v99 = vsub.s32 0, %v98
    %v100 = vrot.slane %v87, %v99
    %vm102 = vcmask 261120
    %v104 = vsel %vm102, %v91, 0
    %106 = vmatprep.subr.mxu0 0.0
    %107 = vmatpush1.msra.mxu0 0.0
    %108 = vmatprep.subr.mxu0 0.0
    %109 = vmatpush1.msra.mxu0 0.0
    %110 = vmatprep.subr.mxu0 0.0
    %111 = vmatpush1.msra.mxu0 0.0
    %112 = vmatprep.subr.mxu0 0.0
    %113 = vmatpush1.msra.mxu0 0.0
    %114 = vmatprep.subr.mxu0 0.0
    %115 = vmatpush1.msra.mxu0 0.0
    %116 = vmatprep.subr.mxu0 0.0
    %117 = vmatpush1.msra.mxu0 0.0
    %118 = vmatprep.subr.mxu0 0.0
    %119 = vmatpush1.msra.mxu0 0.0
    %120 = vmatprep.subr.mxu0 0.0
    %121 = vmatpush1.msra.mxu0 0.0
    %122 = vmatprep.subr.mxu0 0.0
    %123 = vmatpush1.msra.mxu0 0.0
    %124 = vmatprep.subr.mxu0 0.0
    %125 = vmatpush1.msra.mxu0 0.0
    %126 = vmatprep.subr.mxu0 0.0
    %127 = vmatpush1.msra.mxu0 0.0
    %128 = vmatprep.subr.mxu0 0.0
    %129 = vmatpush1.msra.mxu0 0.0
    %130 = vmatprep.subr.mxu0 0.0
    %131 = vmatpush1.msra.mxu0 %v95
    %132 = vmatprep.subr.mxu0 0.0
    %133 = vmatpush1.msra.mxu0 %v94
    %134 = vmatprep.subr.mxu0 0.0
    %135 = vmatpush1.msra.mxu0 %v93
    %136 = vmatprep.subr.mxu0 0.0
    %137 = vmatpush1.msra.mxu0 %v92
    %138 = vmatprep.subr.mxu0 0.0
    %139 = vmatpush2.msra.mxu0 0.0
    %140 = vmatprep.subr.mxu0 0.0
    %141 = vmatpush2.msra.mxu0 0.0
    %142 = vmatprep.subr.mxu0 0.0
    %143 = vmatpush2.msra.mxu0 0.0
    %144 = vmatprep.subr.mxu0 0.0
    %145 = vmatpush2.msra.mxu0 0.0
    %146 = vmatprep.subr.mxu0 0.0
    %147 = vmatpush2.msra.mxu0 0.0
    %148 = vmatprep.subr.mxu0 0.0
    %149 = vmatpush2.msra.mxu0 0.0
    %150 = vmatprep.subr.mxu0 0.0
    %151 = vmatpush2.msra.mxu0 0.0
    %152 = vmatprep.subr.mxu0 0.0
    %153 = vmatpush2.msra.mxu0 0.0
    %154 = vmatprep.subr.mxu0 0.0
    %155 = vmatpush2.msra.mxu0 0.0
    %156 = vmatprep.subr.mxu0 0.0
    %157 = vmatpush2.msra.mxu0 0.0
    %158 = vmatprep.subr.mxu0 0.0
    %159 = vmatpush2.msra.mxu0 0.0
    %160 = vmatprep.subr.mxu0 0.0
    %161 = vmatpush2.msra.mxu0 0.0
    %162 = vmatprep.subr.mxu0 0.0
    %163 = vmatpush2.msra.mxu0 0.0
    %164 = vmatprep.subr.mxu0 0.0
    %165 = vmatpush2.msra.mxu0 0.0
    %166 = vmatprep.subr.mxu0 0.0
    %167 = vmatpush2.msra.mxu0 0.0
    %168 = vmatprep.subr.mxu0 0.0
    %169 = vmatpush2.msra.mxu0 0.0
    %170 = vmatprep.mubr.f32.mxu0 0.0
    %171 = vmatmul.mubr.f32.gmra.mxu0 %v104
    %v172 = vpop.f32.mrf.mxu0
    %v173 = vadd.f32 %v100, %v172
    %v174 = vpop.f32.mrf.mxu0
    %175 = vdwg.mxu0
    %v176 = vmax.f32 %v173, 0.0
    %v177 = vld [vmem:[#allocation8] sm:$0xff]
    %v178 = vld [vmem:[#allocation8 + $0x8] sm:$0xff]
    %v179 = vld [vmem:[#allocation8 + $0x10] sm:$0xff]
    %v180 = vld [vmem:[#allocation8 + $0x18] sm:$0xff]
    %v181 = vld [vmem:[#allocation8 + $0x20] sm:$0xff]
    %v182 = vld [vmem:[#allocation8 + $0x28] sm:$0xff]
    %v183 = vld [vmem:[#allocation8 + $0x30] sm:$0xff]
    %v184 = vld [vmem:[#allocation8 + $0x38] sm:$0xff]
    %v185 = vld [vmem:[#allocation8 + $0x40] sm:$0xff]
    %v186 = vld [vmem:[#allocation8 + $0x48] sm:$0xff]
    %v187 = vld [vmem:[#allocation8 + $0x50] sm:$0xff]
    %v188 = vld [vmem:[#allocation8 + $0x58] sm:$0xff]
    %v189 = vld [vmem:[#allocation8 + $0x60] sm:$0xff]
    %v190 = vld [vmem:[#allocation8 + $0x68] sm:$0xff]
    %v191 = vld [vmem:[#allocation8 + $0x70] sm:$0xff]
    %v192 = vld [vmem:[#allocation8 + $0x78] sm:$0xff]
    %v193 = vld [vmem:[#allocation8 + $0x80] sm:$0xff]
    %v194 = vld [vmem:[#allocation8 + $0x88] sm:$0xff]
    %v195 = vld [vmem:[#allocation8 + $0x90] sm:$0xff]
    %v196 = vld [vmem:[#allocation8 + $0x98] sm:$0xff]
    %v197 = vld [vmem:[#allocation8 + $0xa0] sm:$0xff]
    %v198 = vld [vmem:[#allocation8 + $0xa8] sm:$0xff]
    %v199 = vld [vmem:[#allocation8 + $0xb0] sm:$0xff]
    %v200 = vld [vmem:[#allocation8 + $0xb8] sm:$0xff]
    %v201 = vld [vmem:[#allocation8 + $0xc0] sm:$0xff]
    %v202 = vld [vmem:[#allocation8 + $0xc8] sm:$0xff]
    %v203 = vld [vmem:[#allocation8 + $0xd0] sm:$0xff]
    %v204 = vld [vmem:[#allocation8 + $0xd8] sm:$0xff]
    %v205 = vld [vmem:[#allocation8 + $0xe0] sm:$0xff]
    %v206 = vld [vmem:[#allocation8 + $0xe8] sm:$0xff]
    %v207 = vld [vmem:[#allocation8 + $0xf0] sm:$0xff]
    %v208 = vld [vmem:[#allocation8 + $0xf8] sm:$0xff]
    %v210 = vlaneseq
    %v211 = vshrl.u32 %v210, 7
    %v212 = vsub.s32 0, %v211
    %v213 = vrot.slane %v88, %v212
    %v214 = vlaneseq
    %v215 = vshrl.u32 %v214, 7
    %v216 = vsub.s32 1, %v215
    %v217 = vrot.slane %v88, %v216
    %220 = vmatprep.subr.mxu0 %v208
    %221 = vmatpush1.msra.mxu0 %v207
    %222 = vmatprep.subr.mxu0 %v206
    %223 = vmatpush1.msra.mxu0 %v205
    %224 = vmatprep.subr.mxu0 %v204
    %225 = vmatpush1.msra.mxu0 %v203
    %226 = vmatprep.subr.mxu0 %v202
    %227 = vmatpush1.msra.mxu0 %v201
    %228 = vmatprep.subr.mxu0 %v200
    %229 = vmatpush1.msra.mxu0 %v199
    %230 = vmatprep.subr.mxu0 %v198
    %231 = vmatpush1.msra.mxu0 %v197
    %232 = vmatprep.subr.mxu0 %v196
    %233 = vmatpush1.msra.mxu0 %v195
    %234 = vmatprep.subr.mxu0 %v194
    %235 = vmatpush1.msra.mxu0 %v193
    %236 = vmatprep.subr.mxu0 %v192
    %237 = vmatpush1.msra.mxu0 %v191
    %238 = vmatprep.subr.mxu0 %v190
    %239 = vmatpush1.msra.mxu0 %v189
    %240 = vmatprep.subr.mxu0 %v188
    %241 = vmatpush1.msra.mxu0 %v187
    %242 = vmatprep.subr.mxu0 %v186
    %243 = vmatpush1.msra.mxu0 %v185
    %244 = vmatprep.subr.mxu0 %v184
    %245 = vmatpush1.msra.mxu0 %v183
    %246 = vmatprep.subr.mxu0 %v182
    %247 = vmatpush1.msra.mxu0 %v181
    %248 = vmatprep.subr.mxu0 %v180
    %249 = vmatpush1.msra.mxu0 %v179
    %250 = vmatprep.subr.mxu0 %v178
    %251 = vmatpush1.msra.mxu0 %v177
    %252 = vmatprep.subr.mxu0 0.0
    %253 = vmatpush2.msra.mxu0 0.0
    %254 = vmatprep.subr.mxu0 0.0
    %255 = vmatpush2.msra.mxu0 0.0
    %256 = vmatprep.subr.mxu0 0.0
    %257 = vmatpush2.msra.mxu0 0.0
    %258 = vmatprep.subr.mxu0 0.0
    %259 = vmatpush2.msra.mxu0 0.0
    %260 = vmatprep.subr.mxu0 0.0
    %261 = vmatpush2.msra.mxu0 0.0
    %262 = vmatprep.subr.mxu0 0.0
    %263 = vmatpush2.msra.mxu0 0.0
    %264 = vmatprep.subr.mxu0 0.0
    %265 = vmatpush2.msra.mxu0 0.0
    %266 = vmatprep.subr.mxu0 0.0
    %267 = vmatpush2.msra.mxu0 0.0
    %268 = vmatprep.subr.mxu0 0.0
    %269 = vmatpush2.msra.mxu0 0.0
    %270 = vmatprep.subr.mxu0 0.0
    %271 = vmatpush2.msra.mxu0 0.0
    %272 = vmatprep.subr.mxu0 0.0
    %273 = vmatpush2.msra.mxu0 0.0
    %274 = vmatprep.subr.mxu0 0.0
    %275 = vmatpush2.msra.mxu0 0.0
    %276 = vmatprep.subr.mxu0 0.0
    %277 = vmatpush2.msra.mxu0 0.0
    %278 = vmatprep.subr.mxu0 0.0
    %279 = vmatpush2.msra.mxu0 0.0
    %280 = vmatprep.subr.mxu0 0.0
    %281 = vmatpush2.msra.mxu0 0.0
    %282 = vmatprep.subr.mxu0 0.0
    %283 = vmatpush2.msra.mxu0 0.0
    %284 = vmatprep.mubr.f32.mxu0 0.0
    %285 = vmatmul.mubr.f32.gmra.mxu0 %v176
    %v286 = vpop.f32.mrf.mxu0
    %v287 = vadd.f32 %v213, %v286
    %v288 = vpop.f32.mrf.mxu0
    %v289 = vadd.f32 %v217, %v288
    %290 = vdwg.mxu0
    %v291 = vmax.f32 %v287, 0.0
    %v292 = vmax.f32 %v289, 0.0
    %v293 = vld [vmem:[#allocation9] sm:$0xff]
    %v294 = vld [vmem:[#allocation9 + $0x8] sm:$0xff]
    %v295 = vld [vmem:[#allocation9 + $0x10] sm:$0xff]
    %v296 = vld [vmem:[#allocation9 + $0x18] sm:$0xff]
    %v297 = vld [vmem:[#allocation9 + $0x20] sm:$0xff]
    %v298 = vld [vmem:[#allocation9 + $0x28] sm:$0xff]
    %v299 = vld [vmem:[#allocation9 + $0x30] sm:$0xff]
    %v300 = vld [vmem:[#allocation9 + $0x38] sm:$0xff]
    %v301 = vld [vmem:[#allocation9 + $0x40] sm:$0xff]
    %v302 = vld [vmem:[#allocation9 + $0x48] sm:$0xff]
    %v303 = vld [vmem:[#allocation9 + $0x50] sm:$0xff]
    %v304 = vld [vmem:[#allocation9 + $0x58] sm:$0xff]
    %v305 = vld [vmem:[#allocation9 + $0x60] sm:$0xff]
    %v306 = vld [vmem:[#allocation9 + $0x68] sm:$0xff]
    %v307 = vld [vmem:[#allocation9 + $0x70] sm:$0xff]
    %v308 = vld [vmem:[#allocation9 + $0x78] sm:$0xff]
    %v309 = vld [vmem:[#allocation9 + $0x80] sm:$0xff]
    %v310 = vld [vmem:[#allocation9 + $0x88] sm:$0xff]
    %v311 = vld [vmem:[#allocation9 + $0x90] sm:$0xff]
    %v312 = vld [vmem:[#allocation9 + $0x98] sm:$0xff]
    %v313 = vld [vmem:[#allocation9 + $0xa0] sm:$0xff]
    %v314 = vld [vmem:[#allocation9 + $0xa8] sm:$0xff]
    %v315 = vld [vmem:[#allocation9 + $0xb0] sm:$0xff]
    %v316 = vld [vmem:[#allocation9 + $0xb8] sm:$0xff]
    %v317 = vld [vmem:[#allocation9 + $0xc0] sm:$0xff]
    %v318 = vld [vmem:[#allocation9 + $0xc8] sm:$0xff]
    %v319 = vld [vmem:[#allocation9 + $0xd0] sm:$0xff]
    %v320 = vld [vmem:[#allocation9 + $0xd8] sm:$0xff]
    %v321 = vld [vmem:[#allocation9 + $0xe0] sm:$0xff]
    %v322 = vld [vmem:[#allocation9 + $0xe8] sm:$0xff]
    %v323 = vld [vmem:[#allocation9 + $0xf0] sm:$0xff]
    %v324 = vld [vmem:[#allocation9 + $0xf8] sm:$0xff]
    %v326 = vlaneseq
    %v327 = vshrl.u32 %v326, 7
    %v328 = vsub.s32 0, %v327
    %v329 = vrot.slane %v89, %v328
    %331 = vmatprep.subr.mxu0 0.0
    %332 = vmatpush1.msra.mxu0 %v308
    %333 = vmatprep.subr.mxu0 0.0
    %334 = vmatpush1.msra.mxu0 %v307
    %335 = vmatprep.subr.mxu0 0.0
    %336 = vmatpush1.msra.mxu0 %v306
    %337 = vmatprep.subr.mxu0 0.0
    %338 = vmatpush1.msra.mxu0 %v305
    %339 = vmatprep.subr.mxu0 0.0
    %340 = vmatpush1.msra.mxu0 %v304
    %341 = vmatprep.subr.mxu0 0.0
    %342 = vmatpush1.msra.mxu0 %v303
    %343 = vmatprep.subr.mxu0 0.0
    %344 = vmatpush1.msra.mxu0 %v302
    %345 = vmatprep.subr.mxu0 0.0
    %346 = vmatpush1.msra.mxu0 %v301
    %347 = vmatprep.subr.mxu0 0.0
    %348 = vmatpush1.msra.mxu0 %v300
    %349 = vmatprep.subr.mxu0 0.0
    %350 = vmatpush1.msra.mxu0 %v299
    %351 = vmatprep.subr.mxu0 0.0
    %352 = vmatpush1.msra.mxu0 %v298
    %353 = vmatprep.subr.mxu0 0.0
    %354 = vmatpush1.msra.mxu0 %v297
    %355 = vmatprep.subr.mxu0 0.0
    %356 = vmatpush1.msra.mxu0 %v296
    %357 = vmatprep.subr.mxu0 0.0
    %358 = vmatpush1.msra.mxu0 %v295
    %359 = vmatprep.subr.mxu0 0.0
    %360 = vmatpush1.msra.mxu0 %v294
    %361 = vmatprep.subr.mxu0 0.0
    %362 = vmatpush1.msra.mxu0 %v293
    %363 = vmatprep.subr.mxu0 0.0
    %364 = vmatpush2.msra.mxu0 %v324
    %365 = vmatprep.subr.mxu0 0.0
    %366 = vmatpush2.msra.mxu0 %v323
    %367 = vmatprep.subr.mxu0 0.0
    %368 = vmatpush2.msra.mxu0 %v322
    %369 = vmatprep.subr.mxu0 0.0
    %370 = vmatpush2.msra.mxu0 %v321
    %371 = vmatprep.subr.mxu0 0.0
    %372 = vmatpush2.msra.mxu0 %v320
    %373 = vmatprep.subr.mxu0 0.0
    %374 = vmatpush2.msra.mxu0 %v319
    %375 = vmatprep.subr.mxu0 0.0
    %376 = vmatpush2.msra.mxu0 %v318
    %377 = vmatprep.subr.mxu0 0.0
    %378 = vmatpush2.msra.mxu0 %v317
    %379 = vmatprep.subr.mxu0 0.0
    %380 = vmatpush2.msra.mxu0 %v316
    %381 = vmatprep.subr.mxu0 0.0
    %382 = vmatpush2.msra.mxu0 %v315
    %383 = vmatprep.subr.mxu0 0.0
    %384 = vmatpush2.msra.mxu0 %v314
    %385 = vmatprep.subr.mxu0 0.0
    %386 = vmatpush2.msra.mxu0 %v313
    %387 = vmatprep.subr.mxu0 0.0
    %388 = vmatpush2.msra.mxu0 %v312
    %389 = vmatprep.subr.mxu0 0.0
    %390 = vmatpush2.msra.mxu0 %v311
    %391 = vmatprep.subr.mxu0 0.0
    %392 = vmatpush2.msra.mxu0 %v310
    %393 = vmatprep.subr.mxu0 0.0
    %394 = vmatpush2.msra.mxu0 %v309
    %395 = vmatprep.mubr.f32.mxu0 %v292
    %396 = vmatmul.mubr.f32.gmra.mxu0 %v291
    %v397 = vpop.f32.mrf.mxu0
    %v398 = vadd.f32 %v329, %v397
    %v399 = vpop.f32.mrf.mxu0
    %400 = vdwg.mxu0
    %v401 = vmax.f32 %v398, 0.0
    %v402 = vld [vmem:[%s7] sm:$0x1]
    %v403 = vstv %s90
    %404 = vmatprep.subr.mxu0 0.0
    %405 = vmatpush1.xpose.msra.mxu0 0.0
    %406 = vmatprep.subr.mxu0 0.0
    %407 = vmatpush1.xpose.msra.mxu0 0.0
    %408 = vmatprep.subr.mxu0 0.0
    %409 = vmatpush1.xpose.msra.mxu0 0.0
    %410 = vmatprep.subr.mxu0 0.0
    %411 = vmatpush1.xpose.msra.mxu0 0.0
    %412 = vmatprep.subr.mxu0 0.0
    %413 = vmatpush1.xpose.msra.mxu0 0.0
    %414 = vmatprep.subr.mxu0 0.0
    %415 = vmatpush1.xpose.msra.mxu0 0.0
    %416 = vmatprep.subr.mxu0 0.0
    %417 = vmatpush1.xpose.msra.mxu0 0.0
    %418 = vmatprep.subr.mxu0 0.0
    %419 = vmatpush1.xpose.msra.mxu0 0.0
    %420 = vmatprep.subr.mxu0 0.0
    %421 = vmatpush1.xpose.msra.mxu0 0.0
    %422 = vmatprep.subr.mxu0 0.0
    %423 = vmatpush1.xpose.msra.mxu0 0.0
    %424 = vmatprep.subr.mxu0 0.0
    %425 = vmatpush1.xpose.msra.mxu0 0.0
    %426 = vmatprep.subr.mxu0 0.0
    %427 = vmatpush1.xpose.msra.mxu0 0.0
    %428 = vmatprep.subr.mxu0 0.0
    %429 = vmatpush1.xpose.msra.mxu0 0.0
    %430 = vmatprep.subr.mxu0 0.0
    %431 = vmatpush1.xpose.msra.mxu0 0.0
    %432 = vmatprep.subr.mxu0 0.0
    %433 = vmatpush1.xpose.msra.mxu0 0.0
    %434 = vmatprep.subr.mxu0 0.0
    %435 = vmatpush1.xpose.msra.mxu0 %v401
    %436 = vmatprep.subr.mxu0 0.0
    %437 = vmatpush2.xpose.msra.mxu0 0.0
    %438 = vmatprep.subr.mxu0 0.0
    %439 = vmatpush2.xpose.msra.mxu0 0.0
    %440 = vmatprep.subr.mxu0 0.0
    %441 = vmatpush2.xpose.msra.mxu0 0.0
    %442 = vmatprep.subr.mxu0 0.0
    %443 = vmatpush2.xpose.msra.mxu0 0.0
    %444 = vmatprep.subr.mxu0 0.0
    %445 = vmatpush2.xpose.msra.mxu0 0.0
    %446 = vmatprep.subr.mxu0 0.0
    %447 = vmatpush2.xpose.msra.mxu0 0.0
    %448 = vmatprep.subr.mxu0 0.0
    %449 = vmatpush2.xpose.msra.mxu0 0.0
    %450 = vmatprep.subr.mxu0 0.0
    %451 = vmatpush2.xpose.msra.mxu0 0.0
    %452 = vmatprep.subr.mxu0 0.0
    %453 = vmatpush2.xpose.msra.mxu0 0.0
    %454 = vmatprep.subr.mxu0 0.0
    %455 = vmatpush2.xpose.msra.mxu0 0.0
    %456 = vmatprep.subr.mxu0 0.0
    %457 = vmatpush2.xpose.msra.mxu0 0.0
    %458 = vmatprep.subr.mxu0 0.0
    %459 = vmatpush2.xpose.msra.mxu0 0.0
    %460 = vmatprep.subr.mxu0 0.0
    %461 = vmatpush2.xpose.msra.mxu0 0.0
    %462 = vmatprep.subr.mxu0 0.0
    %463 = vmatpush2.xpose.msra.mxu0 0.0
    %464 = vmatprep.subr.mxu0 0.0
    %465 = vmatpush2.xpose.msra.mxu0 0.0
    %466 = vmatprep.subr.mxu0 0.0
    %467 = vmatpush2.xpose.msra.mxu0 0.0
    %468 = vmatprep.mubr.f32.mxu0 0.0
    %469 = vmatmul.mubr.f32.gmra.mxu0 %v402
    %v470 = vpop.f32.mrf.mxu0
    %v471 = vadd.f32 %v403, %v470
    %v472 = vpop.f32.mrf.mxu0
    %473 = vdwg.mxu0
    %vm474 = vcmask 57344
    %475 = vst.msk [vmem:[#allocation11] sm:$0x1] %vm474, %v471
    // Predicated region
    $region54: #{tpu_custom_call.1} parent=1 // pred_check
      _
    $region55: #{tpu_custom_call.1} parent=1 // pred_check_branch
      %477 = sbr.rel (0) target = $region57
    $region56: #{tpu_custom_call.1} parent=1 // pred_region
      %s479 = ssub.s32 16, 16
      %480 = vsyncadd [#allocation5], %s479
      %s482 = sshll.u32 [#allocation11], 4
      %s483 = int_to_ptr.vmem [resolvable:$true] %s482
      %485 = dma.vmem_to_hbm [thread:$0]  %s483, 16, %s9, [#allocation5]
    $region57: #{tpu_custom_call.1} parent=1 // pred_fallthru
      _
    // Predicated region
    $region58: #{tpu_custom_call.1} parent=1 // pred_check
      _
    $region59: #{tpu_custom_call.1} parent=1 // pred_check_branch
      %487 = sbr.rel (0) target = $region61
    $region60: #{tpu_custom_call.1} parent=1 // pred_region
      %488 = dma.done [#allocation5], 16
    $region61: #{tpu_custom_call.1} parent=1 // pred_fallthru
      _
    %489 = vsyncpa [#allocation4], 1
    %490 = vsyncpa [#allocation7], 1
    %491 = vsyncpa [#allocation10], 1
    %492 = vsyncpa [#allocation5], 1

</llo_original>
